<compile_context>
chip_gen: v7x
topology: tpu7x:2x2x1
jax: 0.10.0
libtpu: 0.0.40
codegen_flags: <defaults>
</compile_context>

<pallas_src>
import functools

import jax
import jax.numpy as jnp
from jax.experimental import pallas as pl
from jax.experimental.pallas import tpu as pltpu


def _cw_attention_kernel(x_ref, w1t_ref, w2_ref, o_ref, *, inv_hw):
    # x_ref  : (1, C, HW_pad)  current batch tile (padded lanes are zero)
    # w1t_ref: (C, hidden)     first Linear weight, transposed (w1.T)
    # w2_ref : (C, hidden)     second Linear weight
    x = x_ref[0]                                                # (C, HW_pad)

    # Squeeze: global average pool. Sum over the lane axis (cross-vreg VPU adds
    # + one final lane reduce) and multiply by a precomputed 1/true_HW constant.
    pooled = jnp.sum(x, axis=-1, keepdims=True) * inv_hw        # (C, 1)

    # Excitation MLP on the VPU (hidden = C // 64 is tiny; MXU would be <1%
    # utilized and would serialize the pipeline on its result FIFO).
    #   h[j] = relu(sum_c w1[j, c] * pooled[c])
    h = jnp.sum(w1t_ref[...] * pooled, axis=0, keepdims=True)   # (1, hidden)
    h = jnp.maximum(h, 0.0)
    #   s[c] = sigmoid(sum_j w2[c, j] * h[j])
    s = jnp.sum(w2_ref[...] * h, axis=-1, keepdims=True)        # (C, 1)
    s = jax.nn.sigmoid(s)

    # Scale: broadcast the per-channel gate over spatial positions.
    o_ref[0] = (x * s).astype(o_ref.dtype)                      # (C, HW_pad)


def cw_attention(x, w1, w2):
    """x: (B, C, H, W) float32; w1: (C//64, C); w2: (C, C//64)."""
    B, C, H, W = x.shape
    HW = H * W
    hidden = w1.shape[0]

    LANE = 128
    HW_pad = ((HW + LANE - 1) // LANE) * LANE
    x_flat = x.reshape(B, C, HW)
    if HW_pad != HW:
        # Zero-pad the lane axis to a 128 multiple -> unmasked vector stores.
        x_flat = jnp.pad(x_flat, ((0, 0), (0, 0), (0, HW_pad - HW)))
    w1t = w1.T                                                   # (C, hidden)

    itemsize = jnp.dtype(x.dtype).itemsize
    tile_bytes = C * HW_pad * itemsize
    weight_bytes = 2 * C * hidden * itemsize
    # 2x double-buffered input + 2x double-buffered output + weights + headroom.
    vmem_need = 4 * tile_bytes + 4 * weight_bytes + (4 << 20)
    vmem_limit = int(min(max(vmem_need, 32 << 20), 100 << 20))

    cost = pl.CostEstimate(
        flops=int(2 * B * C * HW + 4 * B * C * hidden),
        transcendentals=int(B * C),
        bytes_accessed=int(2 * B * C * HW_pad * itemsize + 2 * weight_bytes),
    )

    kernel = functools.partial(_cw_attention_kernel, inv_hw=1.0 / float(HW))

    out_flat = pl.pallas_call(
        kernel,
        out_shape=jax.ShapeDtypeStruct((B, C, HW_pad), x.dtype),
        grid_spec=pltpu.PrefetchScalarGridSpec(
            num_scalar_prefetch=0,
            grid=(B,),
            in_specs=[
                pl.BlockSpec((1, C, HW_pad), lambda b: (b, 0, 0)),
                pl.BlockSpec((C, hidden), lambda b: (0, 0)),
                pl.BlockSpec((C, hidden), lambda b: (0, 0)),
            ],
            out_specs=pl.BlockSpec((1, C, HW_pad), lambda b: (b, 0, 0)),
        ),
        input_output_aliases={0: 0},   # y overwrites x element-for-element
        compiler_params=pltpu.CompilerParams(
            dimension_semantics=("parallel",),
            vmem_limit_bytes=vmem_limit,
        ),
        cost_estimate=cost,
    )(x_flat, w1t, w2)

    if HW_pad != HW:
        out_flat = out_flat[:, :, :HW]
    return out_flat.reshape(B, C, H, W)


def cw_attention_ref(x, w1, w2):
    """Pure-JAX reference mirroring the PyTorch module (full-precision matmuls)."""
    s = jnp.mean(x, axis=(2, 3))                                          # (B, C)
    h = jnp.maximum(
        jnp.einsum("bc,hc->bh", s, w1, precision=jax.lax.Precision.HIGHEST), 0.0)
    g = jax.nn.sigmoid(
        jnp.einsum("bh,ch->bc", h, w2, precision=jax.lax.Precision.HIGHEST))
    return x * g[:, :, None, None]


if __name__ == "__main__":
    # channel=64 => hidden = channel // 64 = 1 (the PyTorch default).
    B, C, H, W = 2, 64, 8, 8
    hidden = C // 64

    key = jax.random.PRNGKey(0)
    kx, k1, k2 = jax.random.split(key, 3)
    x = jax.random.normal(kx, (B, C, H, W), dtype=jnp.float32)
    # Linear weight layout matches PyTorch: (out_features, in_features), no bias.
    w1 = jax.random.normal(k1, (hidden, C), dtype=jnp.float32) * 0.1
    w2 = jax.random.normal(k2, (C, hidden), dtype=jnp.float32) * 0.1

    out = cw_attention(x, w1, w2)
    out = jax.block_until_ready(out)

    ref = cw_attention_ref(x, w1, w2)
    assert out.shape == (B, C, H, W)
    assert jnp.allclose(out, ref, atol=1e-5, rtol=1e-5), "mismatch vs reference"

    print("KERNEL_OK")
</pallas_src>

<mosaic_0001>
module attributes {stable_mosaic.version = 11 : i64} {
  func.func @_cw_attention_kernel(%arg0: i32, %arg1: memref<1x64x128xf32, #tpu.memory_space<vmem>>, %arg2: memref<64x1xf32, #tpu.memory_space<vmem>>, %arg3: memref<64x1xf32, #tpu.memory_space<vmem>>, %arg4: memref<1x64x128xf32, #tpu.memory_space<vmem>>) attributes {dimension_semantics = [#tpu.dimension_semantics<parallel>], iteration_bounds = array<i64: 2>, scalar_prefetch = 0 : i64, scratch_operands = 0 : i64, tpu.core_type = #tpu.core_type<tc>, window_params = [{transform_indices = @transform_0, window_bounds = array<i64: 1, 64, 128>}, {pipeline_mode = #tpu.pipeline_mode<synchronous>, transform_indices = @transform_1, window_bounds = array<i64: 64, 1>}, {pipeline_mode = #tpu.pipeline_mode<synchronous>, transform_indices = @transform_2, window_bounds = array<i64: 64, 1>}, {transform_indices = @transform_3, window_bounds = array<i64: 1, 64, 128>}]} {
    %c0 = arith.constant 0 : index
    %c0_0 = arith.constant 0 : index
    %c0_1 = arith.constant 0 : index
    %0 = vector.load %arg1[%c0, %c0_0, %c0_1] : memref<1x64x128xf32, #tpu.memory_space<vmem>>, vector<1x64x128xf32>
    %1 = vector.shape_cast %0 : vector<1x64x128xf32> to vector<64x128xf32>
    %cst = arith.constant dense<0.000000e+00> : vector<64xf32>
    %2 = vector.multi_reduction <add>, %1, %cst [1] : vector<64x128xf32> to vector<64xf32>
    %3 = vector.shape_cast %2 : vector<64xf32> to vector<64x1xf32>
    %cst_2 = arith.constant 1.562500e-02 : f32
    %4 = vector.broadcast %cst_2 : f32 to vector<64x1xf32>
    %5 = arith.mulf %3, %4 : vector<64x1xf32>
    %c0_3 = arith.constant 0 : index
    %c0_4 = arith.constant 0 : index
    %6 = vector.load %arg2[%c0_3, %c0_4] : memref<64x1xf32, #tpu.memory_space<vmem>>, vector<64x1xf32>
    %7 = arith.mulf %6, %5 : vector<64x1xf32>
    %cst_5 = arith.constant dense<0.000000e+00> : vector<1xf32>
    %8 = vector.multi_reduction <add>, %7, %cst_5 [0] : vector<64x1xf32> to vector<1xf32>
    %9 = vector.shape_cast %8 : vector<1xf32> to vector<1x1xf32>
    %cst_6 = arith.constant 0.000000e+00 : f32
    %10 = vector.broadcast %cst_6 : f32 to vector<1x1xf32>
    %11 = arith.maximumf %9, %10 : vector<1x1xf32>
    %c0_7 = arith.constant 0 : index
    %c0_8 = arith.constant 0 : index
    %12 = vector.load %arg3[%c0_7, %c0_8] : memref<64x1xf32, #tpu.memory_space<vmem>>, vector<64x1xf32>
    %13 = vector.broadcast %11 : vector<1x1xf32> to vector<64x1xf32>
    %14 = arith.mulf %12, %13 : vector<64x1xf32>
    %cst_9 = arith.constant dense<0.000000e+00> : vector<64xf32>
    %15 = vector.multi_reduction <add>, %14, %cst_9 [1] : vector<64x1xf32> to vector<64xf32>
    %16 = vector.shape_cast %15 : vector<64xf32> to vector<64x1xf32>
    %17 = arith.negf %16 : vector<64x1xf32>
    %18 = math.exp %17 : vector<64x1xf32>
    %cst_10 = arith.constant 1.000000e+00 : f32
    %19 = vector.broadcast %cst_10 : f32 to vector<64x1xf32>
    %20 = arith.addf %19, %18 : vector<64x1xf32>
    %21 = arith.divf %19, %20 : vector<64x1xf32>
    %22 = vector.broadcast %21 : vector<64x1xf32> to vector<64x128xf32>
    %23 = arith.mulf %1, %22 : vector<64x128xf32>
    %c0_11 = arith.constant 0 : index
    %c0_12 = arith.constant 0 : index
    %c0_13 = arith.constant 0 : index
    %24 = vector.load %arg4[%c0_11, %c0_12, %c0_13] : memref<1x64x128xf32, #tpu.memory_space<vmem>>, vector<1x64x128xf32>
    %25 = vector.shape_cast %24 : vector<1x64x128xf32> to vector<64x128xf32>
    %26 = vector.shape_cast %23 : vector<64x128xf32> to vector<1x64x128xf32>
    tpu.vector_store %arg4[%c0_11, %c0_12, %c0_13], %26 {strides = array<i32>} : memref<1x64x128xf32, #tpu.memory_space<vmem>>, vector<1x64x128xf32>,
    return
  }
  func.func @transform_0(%arg0: i32) -> (i32, i32, i32) {
    %c0_i32 = arith.constant 0 : i32
    %c0_i32_0 = arith.constant 0 : i32
    %c0_i32_1 = arith.constant 0 : i32
    return %arg0, %c0_i32, %c0_i32_0 : i32, i32, i32
  }
  func.func @transform_1(%arg0: i32) -> (i32, i32) {
    %c0_i32 = arith.constant 0 : i32
    %c0_i32_0 = arith.constant 0 : i32
    %c0_i32_1 = arith.constant 0 : i32
    return %c0_i32, %c0_i32_0 : i32, i32
  }
  func.func @transform_2(%arg0: i32) -> (i32, i32) {
    %c0_i32 = arith.constant 0 : i32
    %c0_i32_0 = arith.constant 0 : i32
    %c0_i32_1 = arith.constant 0 : i32
    return %c0_i32, %c0_i32_0 : i32, i32
  }
  func.func @transform_3(%arg0: i32) -> (i32, i32, i32) {
    %c0_i32 = arith.constant 0 : i32
    %c0_i32_0 = arith.constant 0 : i32
    %c0_i32_1 = arith.constant 0 : i32
    return %arg0, %c0_i32, %c0_i32_0 : i32, i32, i32
  }
}

</mosaic_0001>

<llo_original>
// kernel: tpu_custom_call.1
$region0: #{tpu_custom_call.1}
  #allocation0 [shape = 'u32[]', space=smem, size = 0x4, offset = 0x4, fixed_abs, tag = 'smem constant byte address 0x4 - core index']
  #allocation1 [shape = 'u32[144,128]{1,0:T(1,128)}', space=vmem, size = 0x12000, scoped, tag = 'internal scratch']
  %s0 = inlined_call_operand.hbm [shape: f32[2,64,128], index: 0, kind: input, shape index: {}, may-alias: {0,3}]
  %s1 = inlined_call_operand.vmem [shape: f32[64,1], index: 1, kind: input, shape index: {}]
  %s2 = inlined_call_operand.vmem [shape: f32[64,1], index: 2, kind: input, shape index: {}]
  %s3 = inlined_call_operand.hbm [shape: f32[2,64,128], index: 3, kind: output, shape index: {}, may-alias: {0,3}]
  %s4 = sld [smem:[#allocation0]]
  $region49: #{tpu_custom_call.1} parent=0
    _
  %s6 = ssub.s32 1, %s4
  %s7 = scalar_select 0, %s6, %s4
  $region1: #{tpu_custom_call.1} parent=0
    #allocation2 [shape = 'u8[65536]{0}', space=vmem, size = 0x10000, scoped, tag = 'input window, operand 0']
    #allocation3 [shape = 's32[2]{0}', space=sflag, size = 0x8, scoped, tag = 'scoped memory for tpu_custom_call.1']
    #allocation4 [shape = 's32[2]{0}', space=sflag, size = 0x8, scoped, tag = 'scoped memory for tpu_custom_call.1']
    #allocation5 [shape = 'u8[65536]{0}', space=vmem, size = 0x10000, scoped, tag = 'output window, operand 0']
    %8 = vsyncpa [#allocation3], 0
    %s9 = scalar_lea.sflag [#allocation3], 1
    %10 = vsyncpa %s9, 0
    %11 = vsyncpa [#allocation4], 0
    %s12 = scalar_lea.sflag [#allocation4], 1
    %13 = vsyncpa %s12, 0
    loop: start=0, step=1, limit=4
    $region2: #{tpu_custom_call.1} parent=1 // loop_pre_header
      _
    $region3: #{tpu_custom_call.1} parent=1 // loop_header
      %s15 = sphi 0, %s19
      %p16 = scmp.ge.s32.totalorder %s15, 4
      %s25 = sphi 0, %s27
      %s28 = sphi 0, %s25
      %s29 = sphi 0, %s28
      %s45 = sphi 0, %s29
      %s49 = sphi 0, %s49
      %s51 = sphi 0, %s49
      %s52 = sphi 0, %s51
      %s66 = sphi 0, %s52
      %s70 = sphi 0, %s70
      %s72 = sphi 0, %s70
      %s73 = sphi 0, %s72
      %s87 = sphi 0, %s73
      %s93 = sphi 0, %s95
      %s96 = sphi 0, %s93
      %s97 = sphi 0, %s96
      %s113 = sphi 0, %s97
    $region4: #{tpu_custom_call.1} parent=1 // loop_header_branch
      %18 = sbr.rel (%p16) target = $region8
    $region5: #{tpu_custom_call.1} parent=1 // loop_body
      %s20 = ssub.s32 %s15, 1
      %s21 = ssub.s32 %s15, 2
      %s22 = sadd.s32 %s15, 1
      %s23 = ssub.s32 %s15, %s22
      %p24 = scmp.eq.s32.totalorder %s23, 0
      %s26 = sadd.s32 %s25, 1
      %s27 = scalar_select %p24, %s25, %s26
      %p30 = pneg %p24
      %p31 = scmp.eq.s32.totalorder %s15, 1
      %p32 = por %p30, %p31
      %p33 = scmp.ne.s32.totalorder %s25, %s28
      %p34 = scmp.eq.s32.totalorder %s15, 0
      %p35 = por %p33, %p34
      %p36 = scmp.ne.s32.totalorder %s25, %s28
      %p37 = scmp.eq.s32.totalorder %s20, 1
      %p38 = por %p36, %p37
      %p39 = scmp.ne.s32.totalorder %s28, %s29
      %p40 = scmp.eq.s32.totalorder %s20, 0
      %p41 = por %p39, %p40
      %p42 = scmp.ne.s32.totalorder %s28, %s29
      %p43 = scmp.eq.s32.totalorder %s21, 1
      %p44 = por %p42, %p43
      %p46 = scmp.ne.s32.totalorder %s29, %s45
      %p47 = scmp.eq.s32.totalorder %s21, 0
      %p48 = por %p46, %p47
      %s50 = sadd.s32 %s49, 1
      %p53 = scmp.eq.s32.totalorder %s15, 1
      %p54 = scmp.ne.s32.totalorder %s49, %s51
      %p55 = scmp.eq.s32.totalorder %s15, 0
      %p56 = por %p54, %p55
      %p57 = scmp.ne.s32.totalorder %s49, %s51
      %p58 = scmp.eq.s32.totalorder %s20, 1
      %p59 = por %p57, %p58
      %p60 = scmp.ne.s32.totalorder %s51, %s52
      %p61 = scmp.eq.s32.totalorder %s20, 0
      %p62 = por %p60, %p61
      %p63 = scmp.ne.s32.totalorder %s51, %s52
      %p64 = scmp.eq.s32.totalorder %s21, 1
      %p65 = por %p63, %p64
      %p67 = scmp.ne.s32.totalorder %s52, %s66
      %p68 = scmp.eq.s32.totalorder %s21, 0
      %p69 = por %p67, %p68
      %s71 = sadd.s32 %s70, 1
      %p74 = scmp.eq.s32.totalorder %s15, 1
      %p75 = scmp.ne.s32.totalorder %s70, %s72
      %p76 = scmp.eq.s32.totalorder %s15, 0
      %p77 = por %p75, %p76
      %p78 = scmp.ne.s32.totalorder %s70, %s72
      %p79 = scmp.eq.s32.totalorder %s20, 1
      %p80 = por %p78, %p79
      %p81 = scmp.ne.s32.totalorder %s72, %s73
      %p82 = scmp.eq.s32.totalorder %s20, 0
      %p83 = por %p81, %p82
      %p84 = scmp.ne.s32.totalorder %s72, %s73
      %p85 = scmp.eq.s32.totalorder %s21, 1
      %p86 = por %p84, %p85
      %p88 = scmp.ne.s32.totalorder %s73, %s87
      %p89 = scmp.eq.s32.totalorder %s21, 0
      %p90 = por %p88, %p89
      %s91 = ssub.s32 %s15, %s22
      %p92 = scmp.eq.s32.totalorder %s91, 0
      %s94 = sadd.s32 %s93, 1
      %s95 = scalar_select %p92, %s93, %s94
      %p98 = pneg %p92
      %p99 = scmp.eq.s32.totalorder %s15, 1
      %p100 = por %p98, %p99
      %p101 = scmp.ne.s32.totalorder %s93, %s96
      %p102 = scmp.eq.s32.totalorder %s15, 0
      %p103 = por %p101, %p102
      %p104 = scmp.ne.s32.totalorder %s93, %s96
      %p105 = scmp.eq.s32.totalorder %s20, 1
      %p106 = por %p104, %p105
      %p107 = scmp.ne.s32.totalorder %s96, %s97
      %p108 = scmp.eq.s32.totalorder %s20, 0
      %p109 = por %p107, %p108
      %p110 = scmp.ne.s32.totalorder %s96, %s97
      %p111 = scmp.eq.s32.totalorder %s21, 1
      %p112 = por %p110, %p111
      %p114 = scmp.ne.s32.totalorder %s97, %s113
      %p115 = scmp.eq.s32.totalorder %s21, 0
      %p116 = por %p114, %p115
      %p117 = scmp.le.s32.totalorder 1, %s15
      %p118 = scmp.lt.s32.totalorder %s15, 3
      %p119 = pnand %p117, %p118
      %p120 = pneg %p119
      // Predicated region
      $region9: #{tpu_custom_call.1} parent=5 // pred_check
        _
      $region10: #{tpu_custom_call.1} parent=5 // pred_check_branch
        %122 = sbr.rel (%p119) target = $region12
      $region11: #{tpu_custom_call.1} parent=5 // pred_region
        %s123 = ssub.s32 %s15, 1
        // Predicated region
        $region13: #{tpu_custom_call.1} parent=11 // pred_check
          %p124 = pneg %p62
        $region14: #{tpu_custom_call.1} parent=11 // pred_check_branch
          %126 = sbr.rel (%p124) target = $region16
        $region15: #{tpu_custom_call.1} parent=11 // pred_region
          _
        $region16: #{tpu_custom_call.1} parent=11 // pred_fallthru
          _
        // Predicated region
        $region17: #{tpu_custom_call.1} parent=11 // pred_check
          %p127 = pneg %p83
        $region18: #{tpu_custom_call.1} parent=11 // pred_check_branch
          %129 = sbr.rel (%p127) target = $region20
        $region19: #{tpu_custom_call.1} parent=11 // pred_region
          _
        $region20: #{tpu_custom_call.1} parent=11 // pred_fallthru
          _
      $region12: #{tpu_custom_call.1} parent=5 // pred_fallthru
        _
      %p130 = scmp.lt.s32.totalorder %s15, 2
      // Predicated region
      $region21: #{tpu_custom_call.1} parent=5 // pred_check
        %p131 = pneg %p130
      $region22: #{tpu_custom_call.1} parent=5 // pred_check_branch
        %133 = sbr.rel (%p131) target = $region24
      $region23: #{tpu_custom_call.1} parent=5 // pred_region
        // Predicated region
        $region25: #{tpu_custom_call.1} parent=23 // pred_check
          %p134 = pneg %p35
        $region26: #{tpu_custom_call.1} parent=23 // pred_check_branch
          %136 = sbr.rel (%p134) target = $region28
        $region27: #{tpu_custom_call.1} parent=23 // pred_region
          %s137 = sand.u32 %s25, 1
          %s138 = scalar_lea.sflag [#allocation3], %s137
          %s139 = sand.u32 %s25, 1
          %s140 = smul.addr %s139, 64
          %s141 = scalar_lea.vmem [#allocation2], %s140
          %s143 = ssub.s32 1024, 1024
          %144 = vsyncadd %s138, %s143
          %s145 = smul.addr %s15, 8
          %s146 = smul.addr %s145, 128
          %s147 = scalar_lea.hbm %s0, %s146
          %s148 = sshll.u32 %s141, 4
          %s149 = int_to_ptr.vmem [resolvable:$true] %s148
          %154 = dma.hbm_to_vmem [thread:$0]  %s147, 1024, %s149, %s138, 128, 128, 8
        $region28: #{tpu_custom_call.1} parent=23 // pred_fallthru
          _
      $region24: #{tpu_custom_call.1} parent=5 // pred_fallthru
        _
      %p155 = scmp.le.s32.totalorder 1, %s15
      %p156 = scmp.lt.s32.totalorder %s15, 3
      %p157 = pnand %p155, %p156
      %p158 = pneg %p157
      // Predicated region
      $region29: #{tpu_custom_call.1} parent=5 // pred_check
        _
      $region30: #{tpu_custom_call.1} parent=5 // pred_check_branch
        %160 = sbr.rel (%p157) target = $region32
      $region31: #{tpu_custom_call.1} parent=5 // pred_region
        %s161 = ssub.s32 %s15, 1
        %s162 = sand.u32 %s28, 1
        %s163 = scalar_lea.sflag [#allocation3], %s162
        %s164 = sand.u32 %s28, 1
        %s165 = smul.addr %s164, 64
        %s166 = scalar_lea.vmem [#allocation2], %s165
        // Predicated region
        $region33: #{tpu_custom_call.1} parent=31 // pred_check
          %p167 = pneg %p41
        $region34: #{tpu_custom_call.1} parent=31 // pred_check_branch
          %169 = sbr.rel (%p167) target = $region36
        $region35: #{tpu_custom_call.1} parent=31 // pred_region
          %170 = dma.done %s163, 1024
        $region36: #{tpu_custom_call.1} parent=31 // pred_fallthru
          _
        %s171 = sand.u32 %s28, 1
        %s172 = scalar_lea.sflag [#allocation3], %s171
        %s173 = sand.u32 %s28, 1
        %s174 = smul.addr %s173, 64
        %s175 = scalar_lea.vmem [#allocation2], %s174
        %p176 = pneg %p41
        %p177 = pneg %p38
        %p178 = pneg %p62
        %p179 = pneg %p59
        %p180 = pneg %p83
        %p181 = pneg %p80
        %p182 = pneg %p109
        %p183 = pneg %p106
        %s184 = sand.u32 %s96, 1
        %s185 = scalar_lea.sflag [#allocation4], %s184
        %s186 = sand.u32 %s96, 1
        %s187 = smul.addr %s186, 64
        %s188 = scalar_lea.vmem [#allocation5], %s187
        %v189 = vld [vmem:[%s166] sm:$0xff]
        %v190 = vld [vmem:[%s166 + $0x8] sm:$0xff]
        %v191 = vld [vmem:[%s166 + $0x10] sm:$0xff]
        %v192 = vld [vmem:[%s166 + $0x18] sm:$0xff]
        %v193 = vld [vmem:[%s166 + $0x20] sm:$0xff]
        %v194 = vld [vmem:[%s166 + $0x28] sm:$0xff]
        %v195 = vld [vmem:[%s166 + $0x30] sm:$0xff]
        %v196 = vld [vmem:[%s166 + $0x38] sm:$0xff]
        %197 = vadd.xlane.f32.xlu0 %v189
        %v198 = vpop.xlane.xlu0 %197
        %199 = vadd.xlane.f32.xlu0 %v190
        %v200 = vpop.xlane.xlu0 %199
        %201 = vadd.xlane.f32.xlu0 %v191
        %v202 = vpop.xlane.xlu0 %201
        %203 = vadd.xlane.f32.xlu0 %v192
        %v204 = vpop.xlane.xlu0 %203
        %205 = vadd.xlane.f32.xlu0 %v193
        %v206 = vpop.xlane.xlu0 %205
        %207 = vadd.xlane.f32.xlu0 %v194
        %v208 = vpop.xlane.xlu0 %207
        %209 = vadd.xlane.f32.xlu0 %v195
        %v210 = vpop.xlane.xlu0 %209
        %211 = vadd.xlane.f32.xlu0 %v196
        %v212 = vpop.xlane.xlu0 %211
        %v213 = vmul.f32 %v198, 0.015625
        %v214 = vmul.f32 %v200, 0.015625
        %v215 = vmul.f32 %v202, 0.015625
        %v216 = vmul.f32 %v204, 0.015625
        %v217 = vmul.f32 %v206, 0.015625
        %v218 = vmul.f32 %v208, 0.015625
        %v219 = vmul.f32 %v210, 0.015625
        %v220 = vmul.f32 %v212, 0.015625
        %v221 = vld [vmem:[%s1] sm:$0xff]
        %v222 = vld [vmem:[%s1 + $0x8] sm:$0xff]
        %v223 = vld [vmem:[%s1 + $0x10] sm:$0xff]
        %v224 = vld [vmem:[%s1 + $0x18] sm:$0xff]
        %v225 = vld [vmem:[%s1 + $0x20] sm:$0xff]
        %v226 = vld [vmem:[%s1 + $0x28] sm:$0xff]
        %v227 = vld [vmem:[%s1 + $0x30] sm:$0xff]
        %v228 = vld [vmem:[%s1 + $0x38] sm:$0xff]
        %v229 = vmul.f32 %v221, %v213
        %v230 = vmul.f32 %v222, %v214
        %v231 = vmul.f32 %v223, %v215
        %v232 = vmul.f32 %v224, %v216
        %v233 = vmul.f32 %v225, %v217
        %v234 = vmul.f32 %v226, %v218
        %v235 = vmul.f32 %v227, %v219
        %v236 = vmul.f32 %v228, %v220
        %vm237 = vcmask 7168
        %v238 = vsel %vm237, %v229, 0.0
        %v239 = vsel %vm237, %v230, 0.0
        %v240 = vadd.f32 %v238, %v239
        %v241 = vsel %vm237, %v231, 0.0
        %v242 = vadd.f32 %v240, %v241
        %v243 = vsel %vm237, %v232, 0.0
        %v244 = vadd.f32 %v242, %v243
        %v245 = vsel %vm237, %v233, 0.0
        %v246 = vadd.f32 %v244, %v245
        %v247 = vsel %vm237, %v234, 0.0
        %v248 = vadd.f32 %v246, %v247
        %v249 = vsel %vm237, %v235, 0.0
        %v250 = vadd.f32 %v248, %v249
        %v251 = vsel %vm237, %v236, 0.0
        %v252 = vadd.f32 %v250, %v251
        %v253 = vrot.slane %v252, 4
        %v254 = vadd.f32 %v252, %v253
        %v255 = vrot.slane %v254, 2
        %v256 = vadd.f32 %v254, %v255
        %v257 = vrot.slane %v256, 1
        %v258 = vadd.f32 %v256, %v257
        %v259 = vmax.f32 %v258, 0.0
        %v260 = vld [vmem:[%s2] sm:$0xff]
        %v261 = vld [vmem:[%s2 + $0x8] sm:$0xff]
        %v262 = vld [vmem:[%s2 + $0x10] sm:$0xff]
        %v263 = vld [vmem:[%s2 + $0x18] sm:$0xff]
        %v264 = vld [vmem:[%s2 + $0x20] sm:$0xff]
        %v265 = vld [vmem:[%s2 + $0x28] sm:$0xff]
        %v266 = vld [vmem:[%s2 + $0x30] sm:$0xff]
        %v267 = vld [vmem:[%s2 + $0x38] sm:$0xff]
        %v268 = vmul.f32 %v260, %v259
        %v269 = vmul.f32 %v261, %v259
        %v270 = vmul.f32 %v262, %v259
        %v271 = vmul.f32 %v263, %v259
        %v272 = vmul.f32 %v264, %v259
        %v273 = vmul.f32 %v265, %v259
        %v274 = vmul.f32 %v266, %v259
        %v275 = vmul.f32 %v267, %v259
        %v276 = vadd.f32 %v268, 0.0
        %v277 = vadd.f32 %v269, 0.0
        %v278 = vadd.f32 %v270, 0.0
        %v279 = vadd.f32 %v271, 0.0
        %v280 = vadd.f32 %v272, 0.0
        %v281 = vadd.f32 %v273, 0.0
        %v282 = vadd.f32 %v274, 0.0
        %v283 = vadd.f32 %v275, 0.0
        %v284 = vxor.u32 %v276, 2147483648
        %v285 = vxor.u32 %v277, 2147483648
        %v286 = vxor.u32 %v278, 2147483648
        %v287 = vxor.u32 %v279, 2147483648
        %v288 = vxor.u32 %v280, 2147483648
        %v289 = vxor.u32 %v281, 2147483648
        %v290 = vxor.u32 %v282, 2147483648
        %v291 = vxor.u32 %v283, 2147483648
        %v292 = vmul.f32 %v284, 1.442695
        %v293 = vpow.pop %v292
        %v294 = vmul.f32 %v285, 1.442695
        %v295 = vpow.pop %v294
        %v296 = vmul.f32 %v286, 1.442695
        %v297 = vpow.pop %v296
        %v298 = vmul.f32 %v287, 1.442695
        %v299 = vpow.pop %v298
        %v300 = vmul.f32 %v288, 1.442695
        %v301 = vpow.pop %v300
        %v302 = vmul.f32 %v289, 1.442695
        %v303 = vpow.pop %v302
        %v304 = vmul.f32 %v290, 1.442695
        %v305 = vpow.pop %v304
        %v306 = vmul.f32 %v291, 1.442695
        %v307 = vpow.pop %v306
        %v308 = vadd.f32 %v293, 1.0
        %v309 = vadd.f32 %v295, 1.0
        %v310 = vadd.f32 %v297, 1.0
        %v311 = vadd.f32 %v299, 1.0
        %v312 = vadd.f32 %v301, 1.0
        %v313 = vadd.f32 %v303, 1.0
        %v314 = vadd.f32 %v305, 1.0
        %v315 = vadd.f32 %v307, 1.0
        %v316 = vrcp.pop %v308
        %v317 = vmul.f32 1.0, %v316
        %v318 = vrcp.pop %v309
        %v319 = vmul.f32 1.0, %v318
        %v320 = vrcp.pop %v310
        %v321 = vmul.f32 1.0, %v320
        %v322 = vrcp.pop %v311
        %v323 = vmul.f32 1.0, %v322
        %v324 = vrcp.pop %v312
        %v325 = vmul.f32 1.0, %v324
        %v326 = vrcp.pop %v313
        %v327 = vmul.f32 1.0, %v326
        %v328 = vrcp.pop %v314
        %v329 = vmul.f32 1.0, %v328
        %v330 = vrcp.pop %v315
        %v331 = vmul.f32 1.0, %v330
        %333 = vset.pattern.permute.xlu0 0
        %334 = vperm.xlu0 %333, %v317
        %v335 = vpop.permute.xlu0 %334
        %338 = vset.pattern.permute.xlu0 0
        %339 = vperm.xlu0 %338, %v319
        %v340 = vpop.permute.xlu0 %339
        %343 = vset.pattern.permute.xlu0 0
        %344 = vperm.xlu0 %343, %v321
        %v345 = vpop.permute.xlu0 %344
        %348 = vset.pattern.permute.xlu0 0
        %349 = vperm.xlu0 %348, %v323
        %v350 = vpop.permute.xlu0 %349
        %353 = vset.pattern.permute.xlu0 0
        %354 = vperm.xlu0 %353, %v325
        %v355 = vpop.permute.xlu0 %354
        %358 = vset.pattern.permute.xlu0 0
        %359 = vperm.xlu0 %358, %v327
        %v360 = vpop.permute.xlu0 %359
        %363 = vset.pattern.permute.xlu0 0
        %364 = vperm.xlu0 %363, %v329
        %v365 = vpop.permute.xlu0 %364
        %368 = vset.pattern.permute.xlu0 0
        %369 = vperm.xlu0 %368, %v331
        %v370 = vpop.permute.xlu0 %369
        %v372 = vmul.f32 %v189, %v335
        %v373 = vmul.f32 %v190, %v340
        %v374 = vmul.f32 %v191, %v345
        %v375 = vmul.f32 %v192, %v350
        %v376 = vmul.f32 %v193, %v355
        %v377 = vmul.f32 %v194, %v360
        %v378 = vmul.f32 %v195, %v365
        %v379 = vmul.f32 %v196, %v370
        %380 = vst [vmem:[%s188] sm:$0xff] %v372
        %381 = vst [vmem:[%s188 + $0x8] sm:$0xff] %v373
        %382 = vst [vmem:[%s188 + $0x10] sm:$0xff] %v374
        %383 = vst [vmem:[%s188 + $0x18] sm:$0xff] %v375
        %384 = vst [vmem:[%s188 + $0x20] sm:$0xff] %v376
        %385 = vst [vmem:[%s188 + $0x28] sm:$0xff] %v377
        %386 = vst [vmem:[%s188 + $0x30] sm:$0xff] %v378
        %387 = vst [vmem:[%s188 + $0x38] sm:$0xff] %v379
        %s388 = sand.u32 %s96, 1
        %s389 = scalar_lea.sflag [#allocation4], %s388
        %s390 = sand.u32 %s96, 1
        %s391 = smul.addr %s390, 64
        %s392 = scalar_lea.vmem [#allocation5], %s391
        // Predicated region
        $region37: #{tpu_custom_call.1} parent=31 // pred_check
          %p393 = pneg %p106
        $region38: #{tpu_custom_call.1} parent=31 // pred_check_branch
          %395 = sbr.rel (%p393) target = $region40
        $region39: #{tpu_custom_call.1} parent=31 // pred_region
          %s397 = ssub.s32 1024, 1024
          %398 = vsyncadd %s389, %s397
          %s399 = smul.addr %s20, 8
          %s400 = smul.addr %s399, 128
          %s401 = scalar_lea.hbm %s3, %s400
          %s402 = sshll.u32 %s392, 4
          %s403 = int_to_ptr.vmem [resolvable:$true] %s402
          %408 = dma.vmem_to_hbm [thread:$0]  %s403, 1024, %s401, %s389, 128, 128, 8
        $region40: #{tpu_custom_call.1} parent=31 // pred_fallthru
          _
      $region32: #{tpu_custom_call.1} parent=5 // pred_fallthru
        _
      %p409 = scmp.le.s32.totalorder 2, %s15
      // Predicated region
      $region41: #{tpu_custom_call.1} parent=5 // pred_check
        %p410 = pneg %p409
      $region42: #{tpu_custom_call.1} parent=5 // pred_check_branch
        %412 = sbr.rel (%p410) target = $region44
      $region43: #{tpu_custom_call.1} parent=5 // pred_region
        %s413 = ssub.s32 %s15, 2
        // Predicated region
        $region45: #{tpu_custom_call.1} parent=43 // pred_check
          %p414 = pneg %p112
        $region46: #{tpu_custom_call.1} parent=43 // pred_check_branch
          %416 = sbr.rel (%p414) target = $region48
        $region47: #{tpu_custom_call.1} parent=43 // pred_region
          %s417 = sand.u32 %s97, 1
          %s418 = scalar_lea.sflag [#allocation4], %s417
          %s419 = sand.u32 %s97, 1
          %s420 = smul.addr %s419, 64
          %s421 = scalar_lea.vmem [#allocation5], %s420
          %422 = dma.done %s418, 1024
        $region48: #{tpu_custom_call.1} parent=43 // pred_fallthru
          _
      $region44: #{tpu_custom_call.1} parent=5 // pred_fallthru
        _
    $region6: #{tpu_custom_call.1} parent=1 // loop_footer
      %s19 = sadd.s32 1, %s15
    $region7: #{tpu_custom_call.1} parent=1 // loop_footer_branch
      %14 = sbr.rel target = $region3
    $region8: #{tpu_custom_call.1} parent=1 // loop_exit
      _
    %423 = vsyncpa [#allocation3], 1
    %s424 = scalar_lea.sflag [#allocation3], 1
    %425 = vsyncpa %s424, 1
    %426 = vsyncpa [#allocation4], 1
    %s427 = scalar_lea.sflag [#allocation4], 1
    %428 = vsyncpa %s427, 1

</llo_original>
